<compile_context>
chip_gen: v7x
topology: tpu7x:2x2x1
jax: 0.10.0
libtpu: 0.0.40
codegen_flags: <defaults>
</compile_context>

<pallas_src>
import math
import functools

import jax
import jax.numpy as jnp
import numpy as np
from jax import lax
from jax.experimental import pallas as pl
from jax.experimental.pallas import tpu as pltpu


def _mha_kernel(xT_ref, wq_ref, wk_ref, wv_ref, bq_ref, bk_ref, bv_ref,
                wo_ref, bo_ref, o_ref, *, num_heads, d_k, seq_len, embed_dim):
    N, C, H = seq_len, embed_dim, num_heads

    # x block is already transposed + cast wrapper-side: (1, C, N) bf16.
    xT = xT_ref[0]                                              # (C, N) bf16

    def proj_T(w_ref, b_ref):
        # (C_out, C_in)[bf16] @ (C_in, N)[bf16] -> (C_out, N), f32 accumulate.
        return jnp.dot(w_ref[...], xT,
                       preferred_element_type=jnp.float32) + b_ref[...]

    # Wq / bq already carry the 1/sqrt(d_k) factor (folded wrapper-side).
    qT = proj_T(wq_ref, bq_ref)                                 # (C, N) f32
    kT = proj_T(wk_ref, bk_ref)
    vT = proj_T(wv_ref, bv_ref)

    # Split heads along the leading (sublane-major) axis: layout-free reshape.
    qh = qT.reshape(H, d_k, N).astype(jnp.bfloat16)             # (H, d_k, N)
    kh = kT.reshape(H, d_k, N).astype(jnp.bfloat16)             # (H, d_k, N)
    vh = vT.reshape(H, d_k, N).astype(jnp.bfloat16)             # (H, d_k, N)

    # Scores for all heads in one batched contraction over d_k, using the
    # transposed-LHS orientation directly (no Q relayout):
    #   s[h, n, m] = sum_d qh[h, d, n] * kh[h, d, m]
    s = lax.dot_general(
        qh, kh,
        dimension_numbers=(((1,), (1,)), ((0,), (0,))),
        preferred_element_type=jnp.float32)                     # (H, N, N) f32

    # Causal mask from a single 2D iota pair, broadcast over heads.
    row = lax.broadcasted_iota(jnp.int32, (1, N, N), 1)
    col = lax.broadcasted_iota(jnp.int32, (1, N, N), 2)
    s = jnp.where(row >= col, s, -jnp.inf)   # strictly-causal: diag kept -> no NaN rows

    # Numerically-stable softmax in f32; normalize via EUP reciprocal.
    m = jnp.max(s, axis=-1, keepdims=True)
    e = jnp.exp(s - m)
    denom = jnp.sum(e, axis=-1, keepdims=True)
    p = (e * pl.reciprocal(denom, approx=True)).astype(jnp.bfloat16)  # (H,N,N)

    # Per-head attention produced transposed:
    #   attnT[h, d, n] = sum_m vh[h, d, m] * p[h, n, m]
    attnT = lax.dot_general(
        vh, p,
        dimension_numbers=(((2,), (2,)), ((0,), (0,))),
        preferred_element_type=jnp.float32)                     # (H, d_k, N)

    # Fused output projection: head concat is a leading-axis merge
    # (H, d_k, N) -> (C, N), then ONE matmul with contraction K = C:
    #   out[n, c] = sum_k attn_flat[k, n] * wo[k, c]
    attn_flat = attnT.reshape(C, N).astype(jnp.bfloat16)        # (C, N)
    out = lax.dot_general(
        attn_flat, wo_ref[...],
        dimension_numbers=(((0,), (0,)), ((), ())),
        preferred_element_type=jnp.float32) + bo_ref[...]       # (N, C) f32

    o_ref[0] = out.astype(o_ref.dtype)


def multi_head_attention(x, w1, b1, wo, bo, *, num_heads):
    """x: (B, N, C) f32.  w1: (C, 3C), b1: (1, 3C), wo: (C, C), bo: (1, C).

    Weights are given in (in, out) math layout (y = x @ W + b); the wrapper
    re-lays them out once for the kernel (bf16 MXU operands, (C_out, C_in)
    blocks, 1/sqrt(d_k) folded into the Q projection).
    """
    B, N, C = x.shape
    H = num_heads
    d_k = C // H
    scale = 1.0 / math.sqrt(d_k)

    # Pre-transpose + pre-cast the activations once (outside the kernel).
    xT = jnp.transpose(x, (0, 2, 1)).astype(jnp.bfloat16)          # (B, C, N)

    # Per-projection weights in (C_out, C_in) layout driving qT = W @ x^T.
    # Scale is folded into Wq / bq in f32 before the bf16 cast.
    wq = jnp.asarray(w1[:, 0 * C:1 * C].T * scale, dtype=jnp.bfloat16)  # (C, C)
    wk = jnp.asarray(w1[:, 1 * C:2 * C].T, dtype=jnp.bfloat16)
    wv = jnp.asarray(w1[:, 2 * C:3 * C].T, dtype=jnp.bfloat16)
    bq = jnp.asarray(b1[0, 0 * C:1 * C] * scale, dtype=jnp.float32).reshape(C, 1)
    bk = jnp.asarray(b1[0, 1 * C:2 * C], dtype=jnp.float32).reshape(C, 1)
    bv = jnp.asarray(b1[0, 2 * C:3 * C], dtype=jnp.float32).reshape(C, 1)
    wo_b = jnp.asarray(wo, dtype=jnp.bfloat16)                      # (C, C)
    bo2 = jnp.asarray(bo.reshape(1, C), dtype=jnp.float32)

    kernel = functools.partial(_mha_kernel, num_heads=H, d_k=d_k,
                               seq_len=N, embed_dim=C)

    return pl.pallas_call(
        kernel,
        out_shape=jax.ShapeDtypeStruct((B, N, C), x.dtype),
        grid_spec=pltpu.PrefetchScalarGridSpec(
            num_scalar_prefetch=0,
            grid=(B,),  # parallel batch axis (>= 2 steps -> both v7x TCs busy)
            in_specs=[
                pl.BlockSpec((1, C, N), lambda b: (b, 0, 0)),      # x^T (bf16)
                pl.BlockSpec((C, C), lambda b: (0, 0)),            # wq (bf16, scaled)
                pl.BlockSpec((C, C), lambda b: (0, 0)),            # wk (bf16)
                pl.BlockSpec((C, C), lambda b: (0, 0)),            # wv (bf16)
                pl.BlockSpec((C, 1), lambda b: (0, 0)),            # bq (f32, scaled)
                pl.BlockSpec((C, 1), lambda b: (0, 0)),            # bk (f32)
                pl.BlockSpec((C, 1), lambda b: (0, 0)),            # bv (f32)
                pl.BlockSpec((C, C), lambda b: (0, 0)),            # W_o (bf16)
                pl.BlockSpec((1, C), lambda b: (0, 0)),            # bo (f32)
            ],
            out_specs=pl.BlockSpec((1, N, C), lambda b: (b, 0, 0)),
        ),
        compiler_params=pltpu.CompilerParams(
            dimension_semantics=("parallel",)),
    )(xT, wq, wk, wv, bq, bk, bv, wo_b, bo2)


def _reference(x, w1, b1, wo, bo, *, num_heads):
    """Pure-JAX (f32) reference matching the PyTorch forward."""
    B, N, C = x.shape
    d_k = C // num_heads
    qkv = x @ w1 + b1                               # (B, N, 3C)
    q, k, v = jnp.split(qkv, 3, axis=-1)
    q = q.reshape(B, N, num_heads, d_k).transpose(0, 2, 1, 3)
    k = k.reshape(B, N, num_heads, d_k).transpose(0, 2, 1, 3)
    v = v.reshape(B, N, num_heads, d_k).transpose(0, 2, 1, 3)
    s = jnp.einsum('bhnd,bhmd->bhnm', q, k) * (1.0 / math.sqrt(d_k))
    mask = jnp.tril(jnp.ones((N, N), dtype=bool))
    s = jnp.where(mask, s, -jnp.inf)
    p = jax.nn.softmax(s, axis=-1)
    o = jnp.einsum('bhnm,bhmd->bhnd', p, v)
    o = o.transpose(0, 2, 1, 3).reshape(B, N, C)
    return o @ wo + bo


if __name__ == "__main__":
    # Small shapes consistent with the module: embed_dim=32, num_heads=4,
    # n_positions >= seq=8, batch=2.
    B, N, C, H = 2, 8, 32, 4

    key = jax.random.PRNGKey(0)
    kx, kw1, kb1, kwo, kbo = jax.random.split(key, 5)

    x = jax.random.normal(kx, (B, N, C), dtype=jnp.float32)

    # Deterministic parameter init (shapes from the module's __init__),
    # stored in (in, out) math layout so y = x @ W + b.
    w1 = jax.random.normal(kw1, (C, 3 * C), dtype=jnp.float32) * (1.0 / math.sqrt(C))
    b1 = jax.random.normal(kb1, (1, 3 * C), dtype=jnp.float32) * 0.02
    wo = jax.random.normal(kwo, (C, C), dtype=jnp.float32) * (1.0 / math.sqrt(C))
    bo = jax.random.normal(kbo, (1, C), dtype=jnp.float32) * 0.02

    out = multi_head_attention(x, w1, b1, wo, bo, num_heads=H)
    out = jax.block_until_ready(out)

    ref = _reference(x, w1, b1, wo, bo, num_heads=H)
    assert out.shape == (B, N, C)
    # bf16 MXU operands + approximate reciprocal => relaxed tolerance vs f32 ref.
    assert np.allclose(np.asarray(out), np.asarray(ref), atol=5e-2, rtol=5e-2), \
        "Pallas output mismatch vs JAX reference"

    print("KERNEL_OK")
</pallas_src>

<mosaic_0001>
module attributes {stable_mosaic.version = 11 : i64} {
  func.func @_mha_kernel(%arg0: i32, %arg1: memref<1x32x8xbf16, #tpu.memory_space<vmem>>, %arg2: memref<32x32xbf16, #tpu.memory_space<vmem>>, %arg3: memref<32x32xbf16, #tpu.memory_space<vmem>>, %arg4: memref<32x32xbf16, #tpu.memory_space<vmem>>, %arg5: memref<32x1xf32, #tpu.memory_space<vmem>>, %arg6: memref<32x1xf32, #tpu.memory_space<vmem>>, %arg7: memref<32x1xf32, #tpu.memory_space<vmem>>, %arg8: memref<32x32xbf16, #tpu.memory_space<vmem>>, %arg9: memref<1x32xf32, #tpu.memory_space<vmem>>, %arg10: memref<1x8x32xf32, #tpu.memory_space<vmem>>) attributes {dimension_semantics = [#tpu.dimension_semantics<parallel>], iteration_bounds = array<i64: 2>, scalar_prefetch = 0 : i64, scratch_operands = 0 : i64, tpu.core_type = #tpu.core_type<tc>, window_params = [{transform_indices = @transform_0, window_bounds = array<i64: 1, 32, 8>}, {pipeline_mode = #tpu.pipeline_mode<synchronous>, transform_indices = @transform_1, window_bounds = array<i64: 32, 32>}, {pipeline_mode = #tpu.pipeline_mode<synchronous>, transform_indices = @transform_2, window_bounds = array<i64: 32, 32>}, {pipeline_mode = #tpu.pipeline_mode<synchronous>, transform_indices = @transform_3, window_bounds = array<i64: 32, 32>}, {pipeline_mode = #tpu.pipeline_mode<synchronous>, transform_indices = @transform_4, window_bounds = array<i64: 32, 1>}, {pipeline_mode = #tpu.pipeline_mode<synchronous>, transform_indices = @transform_5, window_bounds = array<i64: 32, 1>}, {pipeline_mode = #tpu.pipeline_mode<synchronous>, transform_indices = @transform_6, window_bounds = array<i64: 32, 1>}, {pipeline_mode = #tpu.pipeline_mode<synchronous>, transform_indices = @transform_7, window_bounds = array<i64: 32, 32>}, {pipeline_mode = #tpu.pipeline_mode<synchronous>, transform_indices = @transform_8, window_bounds = array<i64: 1, 32>}, {transform_indices = @transform_9, window_bounds = array<i64: 1, 8, 32>}]} {
    %c0 = arith.constant 0 : index
    %c0_0 = arith.constant 0 : index
    %c0_1 = arith.constant 0 : index
    %0 = vector.load %arg1[%c0, %c0_0, %c0_1] : memref<1x32x8xbf16, #tpu.memory_space<vmem>>, vector<1x32x8xbf16>
    %1 = vector.shape_cast %0 : vector<1x32x8xbf16> to vector<32x8xbf16>
    %c0_2 = arith.constant 0 : index
    %c0_3 = arith.constant 0 : index
    %2 = vector.load %arg2[%c0_2, %c0_3] : memref<32x32xbf16, #tpu.memory_space<vmem>>, vector<32x32xbf16>
    %cst = arith.constant dense<0.000000e+00> : vector<32x8xf32>
    %3 = tpu.matmul %2, %1, %cst {dimension_numbers = #tpu.dot_dimension_numbers<[1], [0], [0], [1], [0, 0, 1, 1], [], []>} : vector<32x32xbf16>, vector<32x8xbf16>, vector<32x8xf32> -> vector<32x8xf32>
    %c0_4 = arith.constant 0 : index
    %c0_5 = arith.constant 0 : index
    %4 = vector.load %arg5[%c0_4, %c0_5] : memref<32x1xf32, #tpu.memory_space<vmem>>, vector<32x1xf32>
    %5 = vector.broadcast %4 : vector<32x1xf32> to vector<32x8xf32>
    %6 = arith.addf %3, %5 : vector<32x8xf32>
    %c0_6 = arith.constant 0 : index
    %c0_7 = arith.constant 0 : index
    %7 = vector.load %arg3[%c0_6, %c0_7] : memref<32x32xbf16, #tpu.memory_space<vmem>>, vector<32x32xbf16>
    %cst_8 = arith.constant dense<0.000000e+00> : vector<32x8xf32>
    %8 = tpu.matmul %7, %1, %cst_8 {dimension_numbers = #tpu.dot_dimension_numbers<[1], [0], [0], [1], [0, 0, 1, 1], [], []>} : vector<32x32xbf16>, vector<32x8xbf16>, vector<32x8xf32> -> vector<32x8xf32>
    %c0_9 = arith.constant 0 : index
    %c0_10 = arith.constant 0 : index
    %9 = vector.load %arg6[%c0_9, %c0_10] : memref<32x1xf32, #tpu.memory_space<vmem>>, vector<32x1xf32>
    %10 = vector.broadcast %9 : vector<32x1xf32> to vector<32x8xf32>
    %11 = arith.addf %8, %10 : vector<32x8xf32>
    %c0_11 = arith.constant 0 : index
    %c0_12 = arith.constant 0 : index
    %12 = vector.load %arg4[%c0_11, %c0_12] : memref<32x32xbf16, #tpu.memory_space<vmem>>, vector<32x32xbf16>
    %cst_13 = arith.constant dense<0.000000e+00> : vector<32x8xf32>
    %13 = tpu.matmul %12, %1, %cst_13 {dimension_numbers = #tpu.dot_dimension_numbers<[1], [0], [0], [1], [0, 0, 1, 1], [], []>} : vector<32x32xbf16>, vector<32x8xbf16>, vector<32x8xf32> -> vector<32x8xf32>
    %c0_14 = arith.constant 0 : index
    %c0_15 = arith.constant 0 : index
    %14 = vector.load %arg7[%c0_14, %c0_15] : memref<32x1xf32, #tpu.memory_space<vmem>>, vector<32x1xf32>
    %15 = vector.broadcast %14 : vector<32x1xf32> to vector<32x8xf32>
    %16 = arith.addf %13, %15 : vector<32x8xf32>
    %17 = vector.shape_cast %6 : vector<32x8xf32> to vector<4x8x8xf32>
    %18 = arith.truncf %17 : vector<4x8x8xf32> to vector<4x8x8xbf16>
    %19 = vector.shape_cast %11 : vector<32x8xf32> to vector<4x8x8xf32>
    %20 = arith.truncf %19 : vector<4x8x8xf32> to vector<4x8x8xbf16>
    %21 = vector.shape_cast %16 : vector<32x8xf32> to vector<4x8x8xf32>
    %22 = arith.truncf %21 : vector<4x8x8xf32> to vector<4x8x8xbf16>
    %cst_16 = arith.constant dense<0.000000e+00> : vector<4x8x8xf32>
    %23 = tpu.matmul %18, %20, %cst_16 {dimension_numbers = #tpu.dot_dimension_numbers<[1], [1], [2], [2], [0, 0, 0, 2, 1, 2], [0], [0]>} : vector<4x8x8xbf16>, vector<4x8x8xbf16>, vector<4x8x8xf32> -> vector<4x8x8xf32>
    %24 = tpu.iota {dimensions = array<i32: 1>} : vector<1x8x8xi32>
    %25 = tpu.iota {dimensions = array<i32: 2>} : vector<1x8x8xi32>
    %26 = arith.cmpi sge, %24, %25 : vector<1x8x8xi32>
    %cst_17 = arith.constant 0xFF800000 : f32
    %27 = vector.shape_cast %26 : vector<1x8x8xi1> to vector<1x8x8xi1>
    %28 = vector.broadcast %27 : vector<1x8x8xi1> to vector<4x8x8xi1>
    %29 = vector.broadcast %cst_17 : f32 to vector<4x8x8xf32>
    %30 = arith.select %28, %23, %29 : vector<4x8x8xi1>, vector<4x8x8xf32>
    %cst_18 = arith.constant dense<0xFF800000> : vector<4x8xf32>
    %31 = vector.multi_reduction <maximumf>, %30, %cst_18 [2] : vector<4x8x8xf32> to vector<4x8xf32>
    %32 = vector.shape_cast %31 : vector<4x8xf32> to vector<4x8x1xf32>
    %33 = vector.broadcast %32 : vector<4x8x1xf32> to vector<4x8x8xf32>
    %34 = arith.subf %30, %33 : vector<4x8x8xf32>
    %35 = math.exp %34 : vector<4x8x8xf32>
    %cst_19 = arith.constant dense<0.000000e+00> : vector<4x8xf32>
    %36 = vector.multi_reduction <add>, %35, %cst_19 [2] : vector<4x8x8xf32> to vector<4x8xf32>
    %37 = vector.shape_cast %36 : vector<4x8xf32> to vector<4x8x1xf32>
    %38 = tpu.reciprocal %37 {approx = true} : vector<4x8x1xf32> -> vector<4x8x1xf32>
    %39 = vector.broadcast %38 : vector<4x8x1xf32> to vector<4x8x8xf32>
    %40 = arith.mulf %35, %39 : vector<4x8x8xf32>
    %41 = arith.truncf %40 : vector<4x8x8xf32> to vector<4x8x8xbf16>
    %cst_20 = arith.constant dense<0.000000e+00> : vector<4x8x8xf32>
    %42 = tpu.matmul %22, %41, %cst_20 {dimension_numbers = #tpu.dot_dimension_numbers<[2], [2], [1], [1], [0, 0, 0, 1, 1, 1], [0], [0]>} : vector<4x8x8xbf16>, vector<4x8x8xbf16>, vector<4x8x8xf32> -> vector<4x8x8xf32>
    %43 = vector.shape_cast %42 : vector<4x8x8xf32> to vector<32x8xf32>
    %44 = arith.truncf %43 : vector<32x8xf32> to vector<32x8xbf16>
    %c0_21 = arith.constant 0 : index
    %c0_22 = arith.constant 0 : index
    %45 = vector.load %arg8[%c0_21, %c0_22] : memref<32x32xbf16, #tpu.memory_space<vmem>>, vector<32x32xbf16>
    %cst_23 = arith.constant dense<0.000000e+00> : vector<8x32xf32>
    %46 = tpu.matmul %44, %45, %cst_23 {dimension_numbers = #tpu.dot_dimension_numbers<[0], [0], [1], [1], [0, 1, 1, 1], [], []>} : vector<32x8xbf16>, vector<32x32xbf16>, vector<8x32xf32> -> vector<8x32xf32>
    %c0_24 = arith.constant 0 : index
    %c0_25 = arith.constant 0 : index
    %47 = vector.load %arg9[%c0_24, %c0_25] : memref<1x32xf32, #tpu.memory_space<vmem>>, vector<1x32xf32>
    %48 = vector.broadcast %47 : vector<1x32xf32> to vector<8x32xf32>
    %49 = arith.addf %46, %48 : vector<8x32xf32>
    %c0_26 = arith.constant 0 : index
    %c0_27 = arith.constant 0 : index
    %c0_28 = arith.constant 0 : index
    %50 = vector.load %arg10[%c0_26, %c0_27, %c0_28] : memref<1x8x32xf32, #tpu.memory_space<vmem>>, vector<1x8x32xf32>
    %51 = vector.shape_cast %50 : vector<1x8x32xf32> to vector<8x32xf32>
    %52 = vector.shape_cast %49 : vector<8x32xf32> to vector<1x8x32xf32>
    tpu.vector_store %arg10[%c0_26, %c0_27, %c0_28], %52 {strides = array<i32>} : memref<1x8x32xf32, #tpu.memory_space<vmem>>, vector<1x8x32xf32>,
    return
  }
  func.func @transform_0(%arg0: i32) -> (i32, i32, i32) {
    %c0_i32 = arith.constant 0 : i32
    %c0_i32_0 = arith.constant 0 : i32
    %c0_i32_1 = arith.constant 0 : i32
    return %arg0, %c0_i32, %c0_i32_0 : i32, i32, i32
  }
  func.func @transform_1(%arg0: i32) -> (i32, i32) {
    %c0_i32 = arith.constant 0 : i32
    %c0_i32_0 = arith.constant 0 : i32
    %c0_i32_1 = arith.constant 0 : i32
    return %c0_i32, %c0_i32_0 : i32, i32
  }
  func.func @transform_2(%arg0: i32) -> (i32, i32) {
    %c0_i32 = arith.constant 0 : i32
    %c0_i32_0 = arith.constant 0 : i32
    %c0_i32_1 = arith.constant 0 : i32
    return %c0_i32, %c0_i32_0 : i32, i32
  }
  func.func @transform_3(%arg0: i32) -> (i32, i32) {
    %c0_i32 = arith.constant 0 : i32
    %c0_i32_0 = arith.constant 0 : i32
    %c0_i32_1 = arith.constant 0 : i32
    return %c0_i32, %c0_i32_0 : i32, i32
  }
  func.func @transform_4(%arg0: i32) -> (i32, i32) {
    %c0_i32 = arith.constant 0 : i32
    %c0_i32_0 = arith.constant 0 : i32
    %c0_i32_1 = arith.constant 0 : i32
    return %c0_i32, %c0_i32_0 : i32, i32
  }
  func.func @transform_5(%arg0: i32) -> (i32, i32) {
    %c0_i32 = arith.constant 0 : i32
    %c0_i32_0 = arith.constant 0 : i32
    %c0_i32_1 = arith.constant 0 : i32
    return %c0_i32, %c0_i32_0 : i32, i32
  }
  func.func @transform_6(%arg0: i32) -> (i32, i32) {
    %c0_i32 = arith.constant 0 : i32
    %c0_i32_0 = arith.constant 0 : i32
    %c0_i32_1 = arith.constant 0 : i32
    return %c0_i32, %c0_i32_0 : i32, i32
  }
  func.func @transform_7(%arg0: i32) -> (i32, i32) {
    %c0_i32 = arith.constant 0 : i32
    %c0_i32_0 = arith.constant 0 : i32
    %c0_i32_1 = arith.constant 0 : i32
    return %c0_i32, %c0_i32_0 : i32, i32
  }
  func.func @transform_8(%arg0: i32) -> (i32, i32) {
    %c0_i32 = arith.constant 0 : i32
    %c0_i32_0 = arith.constant 0 : i32
    %c0_i32_1 = arith.constant 0 : i32
    return %c0_i32, %c0_i32_0 : i32, i32
  }
  func.func @transform_9(%arg0: i32) -> (i32, i32, i32) {
    %c0_i32 = arith.constant 0 : i32
    %c0_i32_0 = arith.constant 0 : i32
    %c0_i32_1 = arith.constant 0 : i32
    return %arg0, %c0_i32, %c0_i32_0 : i32, i32, i32
  }
}

</mosaic_0001>

<llo_original>
// kernel: tpu_custom_call.1
$region0: #{tpu_custom_call.1}
  #allocation0 [shape = 'u32[]', space=smem, size = 0x4, offset = 0x4, fixed_abs, tag = 'smem constant byte address 0x4 - core index']
  #allocation1 [shape = 'u32[144,128]{1,0:T(1,128)}', space=vmem, size = 0x12000, scoped, tag = 'internal scratch']
  %s0 = inlined_call_operand.vmem [shape: bf16[2,32,8], index: 0, kind: input, shape index: {}]
  %s1 = inlined_call_operand.vmem [shape: bf16[32,32], index: 1, kind: input, shape index: {}]
  %s2 = inlined_call_operand.vmem [shape: bf16[32,32], index: 2, kind: input, shape index: {}]
  %s3 = inlined_call_operand.vmem [shape: bf16[32,32], index: 3, kind: input, shape index: {}]
  %s4 = inlined_call_operand.vmem [shape: f32[32,1], index: 4, kind: input, shape index: {}]
  %s5 = inlined_call_operand.vmem [shape: f32[32,1], index: 5, kind: input, shape index: {}]
  %s6 = inlined_call_operand.vmem [shape: f32[32,1], index: 6, kind: input, shape index: {}]
  %s7 = inlined_call_operand.vmem [shape: bf16[32,32], index: 7, kind: input, shape index: {}]
  %s8 = inlined_call_operand.vmem [shape: f32[1,32], index: 8, kind: input, shape index: {}]
  %s9 = inlined_call_operand.hbm [shape: f32[2,8,32], index: 9, kind: output, shape index: {}]
  %s10 = sld [smem:[#allocation0]]
  $region69: #{tpu_custom_call.1} parent=0
    _
  %s12 = ssub.s32 1, %s10
  %s13 = scalar_select 0, %s12, %s10
  $region1: #{tpu_custom_call.1} parent=0
    #allocation2 [shape = 'u8[8192]{0}', space=vmem, size = 0x2000, scoped, tag = 'output window, operand 0']
    #allocation3 [shape = 's32[2]{0}', space=sflag, size = 0x8, scoped, tag = 'scoped memory for tpu_custom_call.1']
    %14 = vsyncpa [#allocation3], 0
    %s15 = scalar_lea.sflag [#allocation3], 1
    %16 = vsyncpa %s15, 0
    loop: start=0, step=1, limit=4
    $region2: #{tpu_custom_call.1} parent=1 // loop_pre_header
      _
    $region3: #{tpu_custom_call.1} parent=1 // loop_header
      %s18 = sphi 0, %s22
      %p19 = scmp.ge.s32.totalorder %s18, 4
      %s28 = sphi 0, %s30
      %s31 = sphi 0, %s28
      %s32 = sphi 0, %s31
      %s48 = sphi 0, %s32
      %s52 = sphi 0, %s52
      %s54 = sphi 0, %s52
      %s55 = sphi 0, %s54
      %s69 = sphi 0, %s55
      %s73 = sphi 0, %s73
      %s75 = sphi 0, %s73
      %s76 = sphi 0, %s75
      %s90 = sphi 0, %s76
      %s94 = sphi 0, %s94
      %s96 = sphi 0, %s94
      %s97 = sphi 0, %s96
      %s111 = sphi 0, %s97
      %s115 = sphi 0, %s115
      %s117 = sphi 0, %s115
      %s118 = sphi 0, %s117
      %s132 = sphi 0, %s118
      %s136 = sphi 0, %s136
      %s138 = sphi 0, %s136
      %s139 = sphi 0, %s138
      %s153 = sphi 0, %s139
      %s157 = sphi 0, %s157
      %s159 = sphi 0, %s157
      %s160 = sphi 0, %s159
      %s174 = sphi 0, %s160
      %s178 = sphi 0, %s178
      %s180 = sphi 0, %s178
      %s181 = sphi 0, %s180
      %s195 = sphi 0, %s181
      %s199 = sphi 0, %s199
      %s201 = sphi 0, %s199
      %s202 = sphi 0, %s201
      %s216 = sphi 0, %s202
      %s222 = sphi 0, %s224
      %s225 = sphi 0, %s222
      %s226 = sphi 0, %s225
      %s242 = sphi 0, %s226
    $region4: #{tpu_custom_call.1} parent=1 // loop_header_branch
      %21 = sbr.rel (%p19) target = $region8
    $region5: #{tpu_custom_call.1} parent=1 // loop_body
      %s23 = ssub.s32 %s18, 1
      %s24 = ssub.s32 %s18, 2
      %s25 = sadd.s32 %s18, 1
      %s26 = ssub.s32 %s18, %s25
      %p27 = scmp.eq.s32.totalorder %s26, 0
      %s29 = sadd.s32 %s28, 1
      %s30 = scalar_select %p27, %s28, %s29
      %p33 = pneg %p27
      %p34 = scmp.eq.s32.totalorder %s18, 1
      %p35 = por %p33, %p34
      %p36 = scmp.ne.s32.totalorder %s28, %s31
      %p37 = scmp.eq.s32.totalorder %s18, 0
      %p38 = por %p36, %p37
      %p39 = scmp.ne.s32.totalorder %s28, %s31
      %p40 = scmp.eq.s32.totalorder %s23, 1
      %p41 = por %p39, %p40
      %p42 = scmp.ne.s32.totalorder %s31, %s32
      %p43 = scmp.eq.s32.totalorder %s23, 0
      %p44 = por %p42, %p43
      %p45 = scmp.ne.s32.totalorder %s31, %s32
      %p46 = scmp.eq.s32.totalorder %s24, 1
      %p47 = por %p45, %p46
      %p49 = scmp.ne.s32.totalorder %s32, %s48
      %p50 = scmp.eq.s32.totalorder %s24, 0
      %p51 = por %p49, %p50
      %s53 = sadd.s32 %s52, 1
      %p56 = scmp.eq.s32.totalorder %s18, 1
      %p57 = scmp.ne.s32.totalorder %s52, %s54
      %p58 = scmp.eq.s32.totalorder %s18, 0
      %p59 = por %p57, %p58
      %p60 = scmp.ne.s32.totalorder %s52, %s54
      %p61 = scmp.eq.s32.totalorder %s23, 1
      %p62 = por %p60, %p61
      %p63 = scmp.ne.s32.totalorder %s54, %s55
      %p64 = scmp.eq.s32.totalorder %s23, 0
      %p65 = por %p63, %p64
      %p66 = scmp.ne.s32.totalorder %s54, %s55
      %p67 = scmp.eq.s32.totalorder %s24, 1
      %p68 = por %p66, %p67
      %p70 = scmp.ne.s32.totalorder %s55, %s69
      %p71 = scmp.eq.s32.totalorder %s24, 0
      %p72 = por %p70, %p71
      %s74 = sadd.s32 %s73, 1
      %p77 = scmp.eq.s32.totalorder %s18, 1
      %p78 = scmp.ne.s32.totalorder %s73, %s75
      %p79 = scmp.eq.s32.totalorder %s18, 0
      %p80 = por %p78, %p79
      %p81 = scmp.ne.s32.totalorder %s73, %s75
      %p82 = scmp.eq.s32.totalorder %s23, 1
      %p83 = por %p81, %p82
      %p84 = scmp.ne.s32.totalorder %s75, %s76
      %p85 = scmp.eq.s32.totalorder %s23, 0
      %p86 = por %p84, %p85
      %p87 = scmp.ne.s32.totalorder %s75, %s76
      %p88 = scmp.eq.s32.totalorder %s24, 1
      %p89 = por %p87, %p88
      %p91 = scmp.ne.s32.totalorder %s76, %s90
      %p92 = scmp.eq.s32.totalorder %s24, 0
      %p93 = por %p91, %p92
      %s95 = sadd.s32 %s94, 1
      %p98 = scmp.eq.s32.totalorder %s18, 1
      %p99 = scmp.ne.s32.totalorder %s94, %s96
      %p100 = scmp.eq.s32.totalorder %s18, 0
      %p101 = por %p99, %p100
      %p102 = scmp.ne.s32.totalorder %s94, %s96
      %p103 = scmp.eq.s32.totalorder %s23, 1
      %p104 = por %p102, %p103
      %p105 = scmp.ne.s32.totalorder %s96, %s97
      %p106 = scmp.eq.s32.totalorder %s23, 0
      %p107 = por %p105, %p106
      %p108 = scmp.ne.s32.totalorder %s96, %s97
      %p109 = scmp.eq.s32.totalorder %s24, 1
      %p110 = por %p108, %p109
      %p112 = scmp.ne.s32.totalorder %s97, %s111
      %p113 = scmp.eq.s32.totalorder %s24, 0
      %p114 = por %p112, %p113
      %s116 = sadd.s32 %s115, 1
      %p119 = scmp.eq.s32.totalorder %s18, 1
      %p120 = scmp.ne.s32.totalorder %s115, %s117
      %p121 = scmp.eq.s32.totalorder %s18, 0
      %p122 = por %p120, %p121
      %p123 = scmp.ne.s32.totalorder %s115, %s117
      %p124 = scmp.eq.s32.totalorder %s23, 1
      %p125 = por %p123, %p124
      %p126 = scmp.ne.s32.totalorder %s117, %s118
      %p127 = scmp.eq.s32.totalorder %s23, 0
      %p128 = por %p126, %p127
      %p129 = scmp.ne.s32.totalorder %s117, %s118
      %p130 = scmp.eq.s32.totalorder %s24, 1
      %p131 = por %p129, %p130
      %p133 = scmp.ne.s32.totalorder %s118, %s132
      %p134 = scmp.eq.s32.totalorder %s24, 0
      %p135 = por %p133, %p134
      %s137 = sadd.s32 %s136, 1
      %p140 = scmp.eq.s32.totalorder %s18, 1
      %p141 = scmp.ne.s32.totalorder %s136, %s138
      %p142 = scmp.eq.s32.totalorder %s18, 0
      %p143 = por %p141, %p142
      %p144 = scmp.ne.s32.totalorder %s136, %s138
      %p145 = scmp.eq.s32.totalorder %s23, 1
      %p146 = por %p144, %p145
      %p147 = scmp.ne.s32.totalorder %s138, %s139
      %p148 = scmp.eq.s32.totalorder %s23, 0
      %p149 = por %p147, %p148
      %p150 = scmp.ne.s32.totalorder %s138, %s139
      %p151 = scmp.eq.s32.totalorder %s24, 1
      %p152 = por %p150, %p151
      %p154 = scmp.ne.s32.totalorder %s139, %s153
      %p155 = scmp.eq.s32.totalorder %s24, 0
      %p156 = por %p154, %p155
      %s158 = sadd.s32 %s157, 1
      %p161 = scmp.eq.s32.totalorder %s18, 1
      %p162 = scmp.ne.s32.totalorder %s157, %s159
      %p163 = scmp.eq.s32.totalorder %s18, 0
      %p164 = por %p162, %p163
      %p165 = scmp.ne.s32.totalorder %s157, %s159
      %p166 = scmp.eq.s32.totalorder %s23, 1
      %p167 = por %p165, %p166
      %p168 = scmp.ne.s32.totalorder %s159, %s160
      %p169 = scmp.eq.s32.totalorder %s23, 0
      %p170 = por %p168, %p169
      %p171 = scmp.ne.s32.totalorder %s159, %s160
      %p172 = scmp.eq.s32.totalorder %s24, 1
      %p173 = por %p171, %p172
      %p175 = scmp.ne.s32.totalorder %s160, %s174
      %p176 = scmp.eq.s32.totalorder %s24, 0
      %p177 = por %p175, %p176
      %s179 = sadd.s32 %s178, 1
      %p182 = scmp.eq.s32.totalorder %s18, 1
      %p183 = scmp.ne.s32.totalorder %s178, %s180
      %p184 = scmp.eq.s32.totalorder %s18, 0
      %p185 = por %p183, %p184
      %p186 = scmp.ne.s32.totalorder %s178, %s180
      %p187 = scmp.eq.s32.totalorder %s23, 1
      %p188 = por %p186, %p187
      %p189 = scmp.ne.s32.totalorder %s180, %s181
      %p190 = scmp.eq.s32.totalorder %s23, 0
      %p191 = por %p189, %p190
      %p192 = scmp.ne.s32.totalorder %s180, %s181
      %p193 = scmp.eq.s32.totalorder %s24, 1
      %p194 = por %p192, %p193
      %p196 = scmp.ne.s32.totalorder %s181, %s195
      %p197 = scmp.eq.s32.totalorder %s24, 0
      %p198 = por %p196, %p197
      %s200 = sadd.s32 %s199, 1
      %p203 = scmp.eq.s32.totalorder %s18, 1
      %p204 = scmp.ne.s32.totalorder %s199, %s201
      %p205 = scmp.eq.s32.totalorder %s18, 0
      %p206 = por %p204, %p205
      %p207 = scmp.ne.s32.totalorder %s199, %s201
      %p208 = scmp.eq.s32.totalorder %s23, 1
      %p209 = por %p207, %p208
      %p210 = scmp.ne.s32.totalorder %s201, %s202
      %p211 = scmp.eq.s32.totalorder %s23, 0
      %p212 = por %p210, %p211
      %p213 = scmp.ne.s32.totalorder %s201, %s202
      %p214 = scmp.eq.s32.totalorder %s24, 1
      %p215 = por %p213, %p214
      %p217 = scmp.ne.s32.totalorder %s202, %s216
      %p218 = scmp.eq.s32.totalorder %s24, 0
      %p219 = por %p217, %p218
      %s220 = ssub.s32 %s18, %s25
      %p221 = scmp.eq.s32.totalorder %s220, 0
      %s223 = sadd.s32 %s222, 1
      %s224 = scalar_select %p221, %s222, %s223
      %p227 = pneg %p221
      %p228 = scmp.eq.s32.totalorder %s18, 1
      %p229 = por %p227, %p228
      %p230 = scmp.ne.s32.totalorder %s222, %s225
      %p231 = scmp.eq.s32.totalorder %s18, 0
      %p232 = por %p230, %p231
      %p233 = scmp.ne.s32.totalorder %s222, %s225
      %p234 = scmp.eq.s32.totalorder %s23, 1
      %p235 = por %p233, %p234
      %p236 = scmp.ne.s32.totalorder %s225, %s226
      %p237 = scmp.eq.s32.totalorder %s23, 0
      %p238 = por %p236, %p237
      %p239 = scmp.ne.s32.totalorder %s225, %s226
      %p240 = scmp.eq.s32.totalorder %s24, 1
      %p241 = por %p239, %p240
      %p243 = scmp.ne.s32.totalorder %s226, %s242
      %p244 = scmp.eq.s32.totalorder %s24, 0
      %p245 = por %p243, %p244
      %p246 = scmp.le.s32.totalorder 1, %s18
      %p247 = scmp.lt.s32.totalorder %s18, 3
      %p248 = pnand %p246, %p247
      %p249 = pneg %p248
      // Predicated region
      $region9: #{tpu_custom_call.1} parent=5 // pred_check
        _
      $region10: #{tpu_custom_call.1} parent=5 // pred_check_branch
        %251 = sbr.rel (%p248) target = $region12
      $region11: #{tpu_custom_call.1} parent=5 // pred_region
        %s252 = ssub.s32 %s18, 1
        // Predicated region
        $region13: #{tpu_custom_call.1} parent=11 // pred_check
          %p253 = pneg %p65
        $region14: #{tpu_custom_call.1} parent=11 // pred_check_branch
          %255 = sbr.rel (%p253) target = $region16
        $region15: #{tpu_custom_call.1} parent=11 // pred_region
          _
        $region16: #{tpu_custom_call.1} parent=11 // pred_fallthru
          _
        // Predicated region
        $region17: #{tpu_custom_call.1} parent=11 // pred_check
          %p256 = pneg %p86
        $region18: #{tpu_custom_call.1} parent=11 // pred_check_branch
          %258 = sbr.rel (%p256) target = $region20
        $region19: #{tpu_custom_call.1} parent=11 // pred_region
          _
        $region20: #{tpu_custom_call.1} parent=11 // pred_fallthru
          _
        // Predicated region
        $region21: #{tpu_custom_call.1} parent=11 // pred_check
          %p259 = pneg %p107
        $region22: #{tpu_custom_call.1} parent=11 // pred_check_branch
          %261 = sbr.rel (%p259) target = $region24
        $region23: #{tpu_custom_call.1} parent=11 // pred_region
          _
        $region24: #{tpu_custom_call.1} parent=11 // pred_fallthru
          _
        // Predicated region
        $region25: #{tpu_custom_call.1} parent=11 // pred_check
          %p262 = pneg %p128
        $region26: #{tpu_custom_call.1} parent=11 // pred_check_branch
          %264 = sbr.rel (%p262) target = $region28
        $region27: #{tpu_custom_call.1} parent=11 // pred_region
          _
        $region28: #{tpu_custom_call.1} parent=11 // pred_fallthru
          _
        // Predicated region
        $region29: #{tpu_custom_call.1} parent=11 // pred_check
          %p265 = pneg %p149
        $region30: #{tpu_custom_call.1} parent=11 // pred_check_branch
          %267 = sbr.rel (%p265) target = $region32
        $region31: #{tpu_custom_call.1} parent=11 // pred_region
          _
        $region32: #{tpu_custom_call.1} parent=11 // pred_fallthru
          _
        // Predicated region
        $region33: #{tpu_custom_call.1} parent=11 // pred_check
          %p268 = pneg %p170
        $region34: #{tpu_custom_call.1} parent=11 // pred_check_branch
          %270 = sbr.rel (%p268) target = $region36
        $region35: #{tpu_custom_call.1} parent=11 // pred_region
          _
        $region36: #{tpu_custom_call.1} parent=11 // pred_fallthru
          _
        // Predicated region
        $region37: #{tpu_custom_call.1} parent=11 // pred_check
          %p271 = pneg %p191
        $region38: #{tpu_custom_call.1} parent=11 // pred_check_branch
          %273 = sbr.rel (%p271) target = $region40
        $region39: #{tpu_custom_call.1} parent=11 // pred_region
          _
        $region40: #{tpu_custom_call.1} parent=11 // pred_fallthru
          _
        // Predicated region
        $region41: #{tpu_custom_call.1} parent=11 // pred_check
          %p274 = pneg %p212
        $region42: #{tpu_custom_call.1} parent=11 // pred_check_branch
          %276 = sbr.rel (%p274) target = $region44
        $region43: #{tpu_custom_call.1} parent=11 // pred_region
          _
        $region44: #{tpu_custom_call.1} parent=11 // pred_fallthru
          _
      $region12: #{tpu_custom_call.1} parent=5 // pred_fallthru
        _
      %p277 = scmp.lt.s32.totalorder %s18, 2
      // Predicated region
      $region45: #{tpu_custom_call.1} parent=5 // pred_check
        %p278 = pneg %p277
      $region46: #{tpu_custom_call.1} parent=5 // pred_check_branch
        %280 = sbr.rel (%p278) target = $region48
      $region47: #{tpu_custom_call.1} parent=5 // pred_region
        // Predicated region
        $region49: #{tpu_custom_call.1} parent=47 // pred_check
          %p281 = pneg %p38
        $region50: #{tpu_custom_call.1} parent=47 // pred_check_branch
          %283 = sbr.rel (%p281) target = $region52
        $region51: #{tpu_custom_call.1} parent=47 // pred_region
          %p284 = scmp.lt.s32.totalorder %s18, 1
          %s285 = scalar_select %p284, %s18, 1
          %s286 = smul.addr %s285, 4
          %s287 = smul.addr %s286, 4
          %s288 = scalar_lea.vmem %s0, %s287
        $region52: #{tpu_custom_call.1} parent=47 // pred_fallthru
          _
      $region48: #{tpu_custom_call.1} parent=5 // pred_fallthru
        _
      %p289 = scmp.le.s32.totalorder 1, %s18
      %p290 = scmp.lt.s32.totalorder %s18, 3
      %p291 = pnand %p289, %p290
      %p292 = pneg %p291
      // Predicated region
      $region53: #{tpu_custom_call.1} parent=5 // pred_check
        _
      $region54: #{tpu_custom_call.1} parent=5 // pred_check_branch
        %294 = sbr.rel (%p291) target = $region56
      $region55: #{tpu_custom_call.1} parent=5 // pred_region
        %s295 = ssub.s32 %s18, 1
        %p296 = scmp.lt.s32.totalorder %s23, 1
        %s297 = scalar_select %p296, %s23, 1
        %s298 = smul.addr %s297, 4
        %s299 = smul.addr %s298, 4
        %s300 = scalar_lea.vmem %s0, %s299
        %p301 = pneg %p44
        %p302 = pneg %p41
        %p303 = pneg %p65
        %p304 = pneg %p62
        %p305 = pneg %p86
        %p306 = pneg %p83
        %p307 = pneg %p107
        %p308 = pneg %p104
        %p309 = pneg %p128
        %p310 = pneg %p125
        %p311 = pneg %p149
        %p312 = pneg %p146
        %p313 = pneg %p170
        %p314 = pneg %p167
        %p315 = pneg %p191
        %p316 = pneg %p188
        %p317 = pneg %p212
        %p318 = pneg %p209
        %p319 = pneg %p238
        %p320 = pneg %p235
        %s321 = sand.u32 %s225, 1
        %s322 = scalar_lea.sflag [#allocation3], %s321
        %s323 = sand.u32 %s225, 1
        %s324 = smul.addr %s323, 8
        %s325 = scalar_lea.vmem [#allocation2], %s324
        %p326 = scmp.lt.s32.totalorder %s23, 1
        %s327 = scalar_select %p326, %s23, 1
        %s328 = smul.addr %s327, 4
        %s329 = smul.addr %s328, 4
        %s330 = scalar_lea.vmem %s0, %s329
        %v332 = vld [vmem:[%s330] sm:$0xf]
        %v333 = vld [vmem:[%s330 + $0x4] sm:$0xf]
        %v334 = vld [vmem:[%s330 + $0x8] sm:$0xf]
        %v335 = vld [vmem:[%s330 + $0xc] sm:$0xf]
        %v336 = vld [vmem:[%s1] sm:$0xf]
        %v337 = vld [vmem:[%s1 + $0x4] sm:$0xf]
        %v338 = vld [vmem:[%s1 + $0x8] sm:$0xf]
        %v339 = vld [vmem:[%s1 + $0xc] sm:$0xf]
        %v340 = vld [vmem:[%s4] sm:$0xff]
        %v341 = vld [vmem:[%s4 + $0x8] sm:$0xff]
        %v342 = vld [vmem:[%s4 + $0x10] sm:$0xff]
        %v343 = vld [vmem:[%s4 + $0x18] sm:$0xff]
        %345 = vset.pattern.permute.xlu0 0
        %346 = vperm.xlu0 %345, %v340
        %v347 = vpop.permute.xlu0 %346
        %350 = vset.pattern.permute.xlu0 0
        %351 = vperm.xlu0 %350, %v341
        %v352 = vpop.permute.xlu0 %351
        %355 = vset.pattern.permute.xlu0 0
        %356 = vperm.xlu0 %355, %v342
        %v357 = vpop.permute.xlu0 %356
        %360 = vset.pattern.permute.xlu0 0
        %361 = vperm.xlu0 %360, %v343
        %v362 = vpop.permute.xlu0 %361
        %v368 = vunpack.c.l.b16 %v336
        %v369 = vunpack.c.l.b16 %v337
        %v370 = vunpack.c.l.b16 %v338
        %v371 = vunpack.c.l.b16 %v339
        %v372 = vpack.c.b16 %v369, %v368
        %v373 = vpack.c.b16 %v371, %v370
        %v378 = vunpack.c.l.b16 %v332
        %v379 = vunpack.c.l.b16 %v333
        %v380 = vunpack.c.l.b16 %v334
        %v381 = vunpack.c.l.b16 %v335
        %v382 = vpack.c.b16 %v379, %v378
        %v383 = vpack.c.b16 %v381, %v380
        %vm386 = vcmask 261120
        %v388 = vsel %vm386, %v372, 0
        %v391 = vsel %vm386, %v373, 0
        %393 = vmatprep.subr.bf16.mxu0 0
        %394 = vmatpush1.bf16.msra.mxu0 %v382
        %395 = vmatprep.subr.bf16.mxu0 0
        %396 = vmatpush1.bf16.msra.mxu0 %v383
        %397 = vmatprep.subr.bf16.mxu0 0
        %398 = vmatpush1.bf16.msra.mxu0 0
        %399 = vmatprep.subr.bf16.mxu0 0
        %400 = vmatpush1.bf16.msra.mxu0 0
        %401 = vmatprep.subr.bf16.mxu0 0
        %402 = vmatpush1.bf16.msra.mxu0 0
        %403 = vmatprep.subr.bf16.mxu0 0
        %404 = vmatpush1.bf16.msra.mxu0 0
        %405 = vmatprep.subr.bf16.mxu0 0
        %406 = vmatpush1.bf16.msra.mxu0 0
        %407 = vmatprep.subr.bf16.mxu0 0
        %408 = vmatpush1.bf16.msra.mxu0 0
        %409 = vmatprep.subr.bf16.mxu0 0
        %410 = vmatpush1.bf16.msra.mxu0 0
        %411 = vmatprep.subr.bf16.mxu0 0
        %412 = vmatpush1.bf16.msra.mxu0 0
        %413 = vmatprep.subr.bf16.mxu0 0
        %414 = vmatpush1.bf16.msra.mxu0 0
        %415 = vmatprep.subr.bf16.mxu0 0
        %416 = vmatpush1.bf16.msra.mxu0 0
        %417 = vmatprep.subr.bf16.mxu0 0
        %418 = vmatpush1.bf16.msra.mxu0 0
        %419 = vmatprep.subr.bf16.mxu0 0
        %420 = vmatpush1.bf16.msra.mxu0 0
        %421 = vmatprep.subr.bf16.mxu0 0
        %422 = vmatpush1.bf16.msra.mxu0 0
        %423 = vmatprep.subr.bf16.mxu0 0
        %424 = vmatpush1.bf16.msra.mxu0 0
        %425 = vmatprep.mubr.bf16.mxu0 0
        %426 = vmatmul.mubr.bf16.gmra.mrb[0].mxu0 %v388
        %v427 = vpop.f32.mrb[0].mxu0
        %v428 = vadd.f32 %v347, %v427
        %v429 = vpop.f32.mrb[0].mxu0
        %v430 = vpop.f32.mrb[0].mxu0
        %v431 = vadd.f32 %v352, %v430
        %v432 = vpop.f32.mrb[0].mxu0
        %433 = vmatprep.mubr.bf16.mxu0 0
        %434 = vmatmul.mubr.bf16.gmra.mrb[0].mxu0 %v391
        %v435 = vpop.f32.mrb[0].mxu0
        %v436 = vadd.f32 %v357, %v435
        %v437 = vpop.f32.mrb[0].mxu0
        %v438 = vpop.f32.mrb[0].mxu0
        %v439 = vadd.f32 %v362, %v438
        %v440 = vpop.f32.mrb[0].mxu0
        %441 = vdwg.mxu0
        %v442 = vld [vmem:[%s2] sm:$0xf]
        %v443 = vld [vmem:[%s2 + $0x4] sm:$0xf]
        %v444 = vld [vmem:[%s2 + $0x8] sm:$0xf]
        %v445 = vld [vmem:[%s2 + $0xc] sm:$0xf]
        %v446 = vld [vmem:[%s5] sm:$0xff]
        %v447 = vld [vmem:[%s5 + $0x8] sm:$0xff]
        %v448 = vld [vmem:[%s5 + $0x10] sm:$0xff]
        %v449 = vld [vmem:[%s5 + $0x18] sm:$0xff]
        %451 = vset.pattern.permute.xlu0 0
        %452 = vperm.xlu0 %451, %v446
        %v453 = vpop.permute.xlu0 %452
        %456 = vset.pattern.permute.xlu0 0
        %457 = vperm.xlu0 %456, %v447
        %v458 = vpop.permute.xlu0 %457
        %461 = vset.pattern.permute.xlu0 0
        %462 = vperm.xlu0 %461, %v448
        %v463 = vpop.permute.xlu0 %462
        %466 = vset.pattern.permute.xlu0 0
        %467 = vperm.xlu0 %466, %v449
        %v468 = vpop.permute.xlu0 %467
        %v474 = vunpack.c.l.b16 %v442
        %v475 = vunpack.c.l.b16 %v443
        %v476 = vunpack.c.l.b16 %v444
        %v477 = vunpack.c.l.b16 %v445
        %v478 = vpack.c.b16 %v475, %v474
        %v479 = vpack.c.b16 %v477, %v476
        %v481 = vsel %vm386, %v478, 0
        %v484 = vsel %vm386, %v479, 0
        %486 = vmatprep.subr.bf16.mxu0 0
        %487 = vmatpush1.bf16.msra.mxu0 %v382
        %488 = vmatprep.subr.bf16.mxu0 0
        %489 = vmatpush1.bf16.msra.mxu0 %v383
        %490 = vmatprep.subr.bf16.mxu0 0
        %491 = vmatpush1.bf16.msra.mxu0 0
        %492 = vmatprep.subr.bf16.mxu0 0
        %493 = vmatpush1.bf16.msra.mxu0 0
        %494 = vmatprep.subr.bf16.mxu0 0
        %495 = vmatpush1.bf16.msra.mxu0 0
        %496 = vmatprep.subr.bf16.mxu0 0
        %497 = vmatpush1.bf16.msra.mxu0 0
        %498 = vmatprep.subr.bf16.mxu0 0
        %499 = vmatpush1.bf16.msra.mxu0 0
        %500 = vmatprep.subr.bf16.mxu0 0
        %501 = vmatpush1.bf16.msra.mxu0 0
        %502 = vmatprep.subr.bf16.mxu0 0
        %503 = vmatpush1.bf16.msra.mxu0 0
        %504 = vmatprep.subr.bf16.mxu0 0
        %505 = vmatpush1.bf16.msra.mxu0 0
        %506 = vmatprep.subr.bf16.mxu0 0
        %507 = vmatpush1.bf16.msra.mxu0 0
        %508 = vmatprep.subr.bf16.mxu0 0
        %509 = vmatpush1.bf16.msra.mxu0 0
        %510 = vmatprep.subr.bf16.mxu0 0
        %511 = vmatpush1.bf16.msra.mxu0 0
        %512 = vmatprep.subr.bf16.mxu0 0
        %513 = vmatpush1.bf16.msra.mxu0 0
        %514 = vmatprep.subr.bf16.mxu0 0
        %515 = vmatpush1.bf16.msra.mxu0 0
        %516 = vmatprep.subr.bf16.mxu0 0
        %517 = vmatpush1.bf16.msra.mxu0 0
        %518 = vmatprep.mubr.bf16.mxu0 0
        %519 = vmatmul.mubr.bf16.gmra.mrb[0].mxu0 %v481
        %v520 = vpop.f32.mrb[0].mxu0
        %v521 = vadd.f32 %v453, %v520
        %v522 = vpop.f32.mrb[0].mxu0
        %v523 = vpop.f32.mrb[0].mxu0
        %v524 = vadd.f32 %v458, %v523
        %v525 = vpop.f32.mrb[0].mxu0
        %526 = vmatprep.mubr.bf16.mxu0 0
        %527 = vmatmul.mubr.bf16.gmra.mrb[0].mxu0 %v484
        %v528 = vpop.f32.mrb[0].mxu0
        %v529 = vadd.f32 %v463, %v528
        %v530 = vpop.f32.mrb[0].mxu0
        %v531 = vpop.f32.mrb[0].mxu0
        %v532 = vadd.f32 %v468, %v531
        %v533 = vpop.f32.mrb[0].mxu0
        %534 = vdwg.mxu0
        %v535 = vld [vmem:[%s3] sm:$0xf]
        %v536 = vld [vmem:[%s3 + $0x4] sm:$0xf]
        %v537 = vld [vmem:[%s3 + $0x8] sm:$0xf]
        %v538 = vld [vmem:[%s3 + $0xc] sm:$0xf]
        %v539 = vld [vmem:[%s6] sm:$0xff]
        %v540 = vld [vmem:[%s6 + $0x8] sm:$0xff]
        %v541 = vld [vmem:[%s6 + $0x10] sm:$0xff]
        %v542 = vld [vmem:[%s6 + $0x18] sm:$0xff]
        %544 = vset.pattern.permute.xlu0 0
        %545 = vperm.xlu0 %544, %v539
        %v546 = vpop.permute.xlu0 %545
        %549 = vset.pattern.permute.xlu0 0
        %550 = vperm.xlu0 %549, %v540
        %v551 = vpop.permute.xlu0 %550
        %554 = vset.pattern.permute.xlu0 0
        %555 = vperm.xlu0 %554, %v541
        %v556 = vpop.permute.xlu0 %555
        %559 = vset.pattern.permute.xlu0 0
        %560 = vperm.xlu0 %559, %v542
        %v561 = vpop.permute.xlu0 %560
        %v567 = vunpack.c.l.b16 %v535
        %v568 = vunpack.c.l.b16 %v536
        %v569 = vunpack.c.l.b16 %v537
        %v570 = vunpack.c.l.b16 %v538
        %v571 = vpack.c.b16 %v568, %v567
        %v572 = vpack.c.b16 %v570, %v569
        %v574 = vsel %vm386, %v571, 0
        %v577 = vsel %vm386, %v572, 0
        %579 = vmatprep.subr.bf16.mxu0 0
        %580 = vmatpush1.bf16.msra.mxu0 %v382
        %581 = vmatprep.subr.bf16.mxu0 0
        %582 = vmatpush1.bf16.msra.mxu0 %v383
        %583 = vmatprep.subr.bf16.mxu0 0
        %584 = vmatpush1.bf16.msra.mxu0 0
        %585 = vmatprep.subr.bf16.mxu0 0
        %586 = vmatpush1.bf16.msra.mxu0 0
        %587 = vmatprep.subr.bf16.mxu0 0
        %588 = vmatpush1.bf16.msra.mxu0 0
        %589 = vmatprep.subr.bf16.mxu0 0
        %590 = vmatpush1.bf16.msra.mxu0 0
        %591 = vmatprep.subr.bf16.mxu0 0
        %592 = vmatpush1.bf16.msra.mxu0 0
        %593 = vmatprep.subr.bf16.mxu0 0
        %594 = vmatpush1.bf16.msra.mxu0 0
        %595 = vmatprep.subr.bf16.mxu0 0
        %596 = vmatpush1.bf16.msra.mxu0 0
        %597 = vmatprep.subr.bf16.mxu0 0
        %598 = vmatpush1.bf16.msra.mxu0 0
        %599 = vmatprep.subr.bf16.mxu0 0
        %600 = vmatpush1.bf16.msra.mxu0 0
        %601 = vmatprep.subr.bf16.mxu0 0
        %602 = vmatpush1.bf16.msra.mxu0 0
        %603 = vmatprep.subr.bf16.mxu0 0
        %604 = vmatpush1.bf16.msra.mxu0 0
        %605 = vmatprep.subr.bf16.mxu0 0
        %606 = vmatpush1.bf16.msra.mxu0 0
        %607 = vmatprep.subr.bf16.mxu0 0
        %608 = vmatpush1.bf16.msra.mxu0 0
        %609 = vmatprep.subr.bf16.mxu0 0
        %610 = vmatpush1.bf16.msra.mxu0 0
        %611 = vmatprep.mubr.bf16.mxu0 0
        %612 = vmatmul.mubr.bf16.gmra.mrb[0].mxu0 %v574
        %v613 = vpop.f32.mrb[0].mxu0
        %v614 = vadd.f32 %v546, %v613
        %v615 = vpop.f32.mrb[0].mxu0
        %v616 = vpop.f32.mrb[0].mxu0
        %v617 = vadd.f32 %v551, %v616
        %v618 = vpop.f32.mrb[0].mxu0
        %619 = vmatprep.mubr.bf16.mxu0 0
        %620 = vmatmul.mubr.bf16.gmra.mrb[0].mxu0 %v577
        %v621 = vpop.f32.mrb[0].mxu0
        %v622 = vadd.f32 %v556, %v621
        %v623 = vpop.f32.mrb[0].mxu0
        %v624 = vpop.f32.mrb[0].mxu0
        %v625 = vadd.f32 %v561, %v624
        %v626 = vpop.f32.mrb[0].mxu0
        %627 = vdwg.mxu0
        %v628 = vpack.c.bf16 %v428, %v428
        %v629 = vpack.c.bf16 %v431, %v431
        %v630 = vpack.c.bf16 %v436, %v436
        %v631 = vpack.c.bf16 %v439, %v439
        %v632 = vpack.c.bf16 %v521, %v521
        %v633 = vpack.c.bf16 %v524, %v524
        %v634 = vpack.c.bf16 %v529, %v529
        %v635 = vpack.c.bf16 %v532, %v532
        %v636 = vpack.c.bf16 %v614, %v614
        %v637 = vpack.c.bf16 %v617, %v617
        %v638 = vpack.c.bf16 %v622, %v622
        %v639 = vpack.c.bf16 %v625, %v625
        %640 = vxpose.xlu0.c.b16.start [1/8] %v628, 128
        %641 = vxpose.xlu0.c.b16.cont [2/8] 0, 128
        %642 = vxpose.xlu0.c.b16.cont [3/8] 0, 128
        %643 = vxpose.xlu0.c.b16.cont [4/8] 0, 128
        %644 = vxpose.xlu0.c.b16.cont [5/8] 0, 128
        %645 = vxpose.xlu0.c.b16.cont [6/8] 0, 128
        %646 = vxpose.xlu0.c.b16.cont [7/8] 0, 128
        %647 = vxpose.xlu0.c.b16.end [8/8] 0, 128
        %v648 = vpop.trf.xlu0
        %v649 = vpop.trf.xlu0
        %v650 = vpop.trf.xlu0
        %v651 = vpop.trf.xlu0
        %v652 = vpop.trf.xlu0
        %v653 = vpop.trf.xlu0
        %v654 = vpop.trf.xlu0
        %v655 = vpop.trf.xlu0
        %vm656 = vcmask 64512
        %v658 = vsel %vm656, %v648, 0
        %vm660 = vcmask 1043456
        %v662 = vsel %vm660, %v632, 0
        %664 = vmatprep.subr.bf16.mxu0 0
        %665 = vmatpush1.bf16.msra.mxu0 %v662
        %666 = vmatprep.subr.bf16.mxu0 0
        %667 = vmatpush1.bf16.msra.mxu0 0
        %668 = vmatprep.subr.bf16.mxu0 0
        %669 = vmatpush1.bf16.msra.mxu0 0
        %670 = vmatprep.subr.bf16.mxu0 0
        %671 = vmatpush1.bf16.msra.mxu0 0
        %672 = vmatprep.subr.bf16.mxu0 0
        %673 = vmatpush1.bf16.msra.mxu0 0
        %674 = vmatprep.subr.bf16.mxu0 0
        %675 = vmatpush1.bf16.msra.mxu0 0
        %676 = vmatprep.subr.bf16.mxu0 0
        %677 = vmatpush1.bf16.msra.mxu0 0
        %678 = vmatprep.subr.bf16.mxu0 0
        %679 = vmatpush1.bf16.msra.mxu0 0
        %680 = vmatprep.subr.bf16.mxu0 0
        %681 = vmatpush1.bf16.msra.mxu0 0
        %682 = vmatprep.subr.bf16.mxu0 0
        %683 = vmatpush1.bf16.msra.mxu0 0
        %684 = vmatprep.subr.bf16.mxu0 0
        %685 = vmatpush1.bf16.msra.mxu0 0
        %686 = vmatprep.subr.bf16.mxu0 0
        %687 = vmatpush1.bf16.msra.mxu0 0
        %688 = vmatprep.subr.bf16.mxu0 0
        %689 = vmatpush1.bf16.msra.mxu0 0
        %690 = vmatprep.subr.bf16.mxu0 0
        %691 = vmatpush1.bf16.msra.mxu0 0
        %692 = vmatprep.subr.bf16.mxu0 0
        %693 = vmatpush1.bf16.msra.mxu0 0
        %694 = vmatprep.subr.bf16.mxu0 0
        %695 = vmatpush1.bf16.msra.mxu0 0
        %696 = vmatprep.mubr.bf16.mxu0 0
        %697 = vmatmul.mubr.bf16.gmra.mrb[0].mxu0 %v658
        %v698 = vpop.f32.mrb[0].mxu0
        %v699 = vadd.f32 0.0, %v698
        %v700 = vpop.f32.mrb[0].mxu0
        %v701 = vpop.f32.mrb[0].mxu0
        %v702 = vpop.f32.mrb[0].mxu0
        %703 = vdwg.mxu0
        %704 = vxpose.xlu0.c.b16.start [1/8] %v629, 128
        %705 = vxpose.xlu0.c.b16.cont [2/8] 0, 128
        %706 = vxpose.xlu0.c.b16.cont [3/8] 0, 128
        %707 = vxpose.xlu0.c.b16.cont [4/8] 0, 128
        %708 = vxpose.xlu0.c.b16.cont [5/8] 0, 128
        %709 = vxpose.xlu0.c.b16.cont [6/8] 0, 128
        %710 = vxpose.xlu0.c.b16.cont [7/8] 0, 128
        %711 = vxpose.xlu0.c.b16.end [8/8] 0, 128
        %v712 = vpop.trf.xlu0
        %v713 = vpop.trf.xlu0
        %v714 = vpop.trf.xlu0
        %v715 = vpop.trf.xlu0
        %v716 = vpop.trf.xlu0
        %v717 = vpop.trf.xlu0
        %v718 = vpop.trf.xlu0
        %v719 = vpop.trf.xlu0
        %v721 = vsel %vm656, %v712, 0
        %v724 = vsel %vm660, %v633, 0
        %726 = vmatprep.subr.bf16.mxu0 0
        %727 = vmatpush1.bf16.msra.mxu0 %v724
        %728 = vmatprep.subr.bf16.mxu0 0
        %729 = vmatpush1.bf16.msra.mxu0 0
        %730 = vmatprep.subr.bf16.mxu0 0
        %731 = vmatpush1.bf16.msra.mxu0 0
        %732 = vmatprep.subr.bf16.mxu0 0
        %733 = vmatpush1.bf16.msra.mxu0 0
        %734 = vmatprep.subr.bf16.mxu0 0
        %735 = vmatpush1.bf16.msra.mxu0 0
        %736 = vmatprep.subr.bf16.mxu0 0
        %737 = vmatpush1.bf16.msra.mxu0 0
        %738 = vmatprep.subr.bf16.mxu0 0
        %739 = vmatpush1.bf16.msra.mxu0 0
        %740 = vmatprep.subr.bf16.mxu0 0
        %741 = vmatpush1.bf16.msra.mxu0 0
        %742 = vmatprep.subr.bf16.mxu0 0
        %743 = vmatpush1.bf16.msra.mxu0 0
        %744 = vmatprep.subr.bf16.mxu0 0
        %745 = vmatpush1.bf16.msra.mxu0 0
        %746 = vmatprep.subr.bf16.mxu0 0
        %747 = vmatpush1.bf16.msra.mxu0 0
        %748 = vmatprep.subr.bf16.mxu0 0
        %749 = vmatpush1.bf16.msra.mxu0 0
        %750 = vmatprep.subr.bf16.mxu0 0
        %751 = vmatpush1.bf16.msra.mxu0 0
        %752 = vmatprep.subr.bf16.mxu0 0
        %753 = vmatpush1.bf16.msra.mxu0 0
        %754 = vmatprep.subr.bf16.mxu0 0
        %755 = vmatpush1.bf16.msra.mxu0 0
        %756 = vmatprep.subr.bf16.mxu0 0
        %757 = vmatpush1.bf16.msra.mxu0 0
        %758 = vmatprep.mubr.bf16.mxu0 0
        %759 = vmatmul.mubr.bf16.gmra.mrb[0].mxu0 %v721
        %v760 = vpop.f32.mrb[0].mxu0
        %v761 = vadd.f32 0.0, %v760
        %v762 = vpop.f32.mrb[0].mxu0
        %v763 = vpop.f32.mrb[0].mxu0
        %v764 = vpop.f32.mrb[0].mxu0
        %765 = vdwg.mxu0
        %766 = vxpose.xlu0.c.b16.start [1/8] %v630, 128
        %767 = vxpose.xlu0.c.b16.cont [2/8] 0, 128
        %768 = vxpose.xlu0.c.b16.cont [3/8] 0, 128
        %769 = vxpose.xlu0.c.b16.cont [4/8] 0, 128
        %770 = vxpose.xlu0.c.b16.cont [5/8] 0, 128
        %771 = vxpose.xlu0.c.b16.cont [6/8] 0, 128
        %772 = vxpose.xlu0.c.b16.cont [7/8] 0, 128
        %773 = vxpose.xlu0.c.b16.end [8/8] 0, 128
        %v774 = vpop.trf.xlu0
        %v775 = vpop.trf.xlu0
        %v776 = vpop.trf.xlu0
        %v777 = vpop.trf.xlu0
        %v778 = vpop.trf.xlu0
        %v779 = vpop.trf.xlu0
        %v780 = vpop.trf.xlu0
        %v781 = vpop.trf.xlu0
        %v783 = vsel %vm656, %v774, 0
        %v786 = vsel %vm660, %v634, 0
        %788 = vmatprep.subr.bf16.mxu0 0
        %789 = vmatpush1.bf16.msra.mxu0 %v786
        %790 = vmatprep.subr.bf16.mxu0 0
        %791 = vmatpush1.bf16.msra.mxu0 0
        %792 = vmatprep.subr.bf16.mxu0 0
        %793 = vmatpush1.bf16.msra.mxu0 0
        %794 = vmatprep.subr.bf16.mxu0 0
        %795 = vmatpush1.bf16.msra.mxu0 0
        %796 = vmatprep.subr.bf16.mxu0 0
        %797 = vmatpush1.bf16.msra.mxu0 0
        %798 = vmatprep.subr.bf16.mxu0 0
        %799 = vmatpush1.bf16.msra.mxu0 0
        %800 = vmatprep.subr.bf16.mxu0 0
        %801 = vmatpush1.bf16.msra.mxu0 0
        %802 = vmatprep.subr.bf16.mxu0 0
        %803 = vmatpush1.bf16.msra.mxu0 0
        %804 = vmatprep.subr.bf16.mxu0 0
        %805 = vmatpush1.bf16.msra.mxu0 0
        %806 = vmatprep.subr.bf16.mxu0 0
        %807 = vmatpush1.bf16.msra.mxu0 0
        %808 = vmatprep.subr.bf16.mxu0 0
        %809 = vmatpush1.bf16.msra.mxu0 0
        %810 = vmatprep.subr.bf16.mxu0 0
        %811 = vmatpush1.bf16.msra.mxu0 0
        %812 = vmatprep.subr.bf16.mxu0 0
        %813 = vmatpush1.bf16.msra.mxu0 0
        %814 = vmatprep.subr.bf16.mxu0 0
        %815 = vmatpush1.bf16.msra.mxu0 0
        %816 = vmatprep.subr.bf16.mxu0 0
        %817 = vmatpush1.bf16.msra.mxu0 0
        %818 = vmatprep.subr.bf16.mxu0 0
        %819 = vmatpush1.bf16.msra.mxu0 0
        %820 = vmatprep.mubr.bf16.mxu0 0
        %821 = vmatmul.mubr.bf16.gmra.mrb[0].mxu0 %v783
        %v822 = vpop.f32.mrb[0].mxu0
        %v823 = vadd.f32 0.0, %v822
        %v824 = vpop.f32.mrb[0].mxu0
        %v825 = vpop.f32.mrb[0].mxu0
        %v826 = vpop.f32.mrb[0].mxu0
        %827 = vdwg.mxu0
        %828 = vxpose.xlu0.c.b16.start [1/8] %v631, 128
        %829 = vxpose.xlu0.c.b16.cont [2/8] 0, 128
        %830 = vxpose.xlu0.c.b16.cont [3/8] 0, 128
        %831 = vxpose.xlu0.c.b16.cont [4/8] 0, 128
        %832 = vxpose.xlu0.c.b16.cont [5/8] 0, 128
        %833 = vxpose.xlu0.c.b16.cont [6/8] 0, 128
        %834 = vxpose.xlu0.c.b16.cont [7/8] 0, 128
        %835 = vxpose.xlu0.c.b16.end [8/8] 0, 128
        %v836 = vpop.trf.xlu0
        %v837 = vpop.trf.xlu0
        %v838 = vpop.trf.xlu0
        %v839 = vpop.trf.xlu0
        %v840 = vpop.trf.xlu0
        %v841 = vpop.trf.xlu0
        %v842 = vpop.trf.xlu0
        %v843 = vpop.trf.xlu0
        %v845 = vsel %vm656, %v836, 0
        %v848 = vsel %vm660, %v635, 0
        %850 = vmatprep.subr.bf16.mxu0 0
        %851 = vmatpush1.bf16.msra.mxu0 %v848
        %852 = vmatprep.subr.bf16.mxu0 0
        %853 = vmatpush1.bf16.msra.mxu0 0
        %854 = vmatprep.subr.bf16.mxu0 0
        %855 = vmatpush1.bf16.msra.mxu0 0
        %856 = vmatprep.subr.bf16.mxu0 0
        %857 = vmatpush1.bf16.msra.mxu0 0
        %858 = vmatprep.subr.bf16.mxu0 0
        %859 = vmatpush1.bf16.msra.mxu0 0
        %860 = vmatprep.subr.bf16.mxu0 0
        %861 = vmatpush1.bf16.msra.mxu0 0
        %862 = vmatprep.subr.bf16.mxu0 0
        %863 = vmatpush1.bf16.msra.mxu0 0
        %864 = vmatprep.subr.bf16.mxu0 0
        %865 = vmatpush1.bf16.msra.mxu0 0
        %866 = vmatprep.subr.bf16.mxu0 0
        %867 = vmatpush1.bf16.msra.mxu0 0
        %868 = vmatprep.subr.bf16.mxu0 0
        %869 = vmatpush1.bf16.msra.mxu0 0
        %870 = vmatprep.subr.bf16.mxu0 0
        %871 = vmatpush1.bf16.msra.mxu0 0
        %872 = vmatprep.subr.bf16.mxu0 0
        %873 = vmatpush1.bf16.msra.mxu0 0
        %874 = vmatprep.subr.bf16.mxu0 0
        %875 = vmatpush1.bf16.msra.mxu0 0
        %876 = vmatprep.subr.bf16.mxu0 0
        %877 = vmatpush1.bf16.msra.mxu0 0
        %878 = vmatprep.subr.bf16.mxu0 0
        %879 = vmatpush1.bf16.msra.mxu0 0
        %880 = vmatprep.subr.bf16.mxu0 0
        %881 = vmatpush1.bf16.msra.mxu0 0
        %882 = vmatprep.mubr.bf16.mxu0 0
        %883 = vmatmul.mubr.bf16.gmra.mrb[0].mxu0 %v845
        %v884 = vpop.f32.mrb[0].mxu0
        %v885 = vadd.f32 0.0, %v884
        %v886 = vpop.f32.mrb[0].mxu0
        %v887 = vpop.f32.mrb[0].mxu0
        %v888 = vpop.f32.mrb[0].mxu0
        %889 = vdwg.mxu0
        %v890 = vlaneseq
        %v891 = vshrl.u32 %v890, 7
        %v892 = vlaneseq
        %v893 = vand.u32 %v892, 127
        %vm894 = vcmp.ge.s32.totalorder %v891, %v893
        %v895 = vsel %vm894, 1, 0
        %vm896 = vcmp.eq.s32.totalorder %v895, 1
        %v897 = vsel %vm896, %v699, -inf
        %v898 = vsel %vm896, %v761, -inf
        %v899 = vsel %vm896, %v823, -inf
        %v900 = vsel %vm896, %v885, -inf
        %v901 = vsel %vm656, %v897, -inf
        %902 = vmax.xlane.f32.xlu0 %v901
        %v903 = vpop.xlane.xlu0 %902
        %v904 = vsel %vm656, %v898, -inf
        %905 = vmax.xlane.f32.xlu0 %v904
        %v906 = vpop.xlane.xlu0 %905
        %v907 = vsel %vm656, %v899, -inf
        %908 = vmax.xlane.f32.xlu0 %v907
        %v909 = vpop.xlane.xlu0 %908
        %v910 = vsel %vm656, %v900, -inf
        %911 = vmax.xlane.f32.xlu0 %v910
        %v912 = vpop.xlane.xlu0 %911
        %v913 = vsub.f32 %v897, %v903
        %v914 = vsub.f32 %v898, %v906
        %v915 = vsub.f32 %v899, %v909
        %v916 = vsub.f32 %v900, %v912
        %v917 = vmul.f32 %v913, 1.442695
        %v918 = vpow.pop %v917
        %v919 = vmul.f32 %v914, 1.442695
        %v920 = vpow.pop %v919
        %v921 = vmul.f32 %v915, 1.442695
        %v922 = vpow.pop %v921
        %v923 = vmul.f32 %v916, 1.442695
        %v924 = vpow.pop %v923
        %v925 = vsel %vm656, %v918, 0.0
        %926 = vadd.xlane.f32.xlu0 %v925
        %v927 = vpop.xlane.xlu0 %926
        %v928 = vsel %vm656, %v920, 0.0
        %929 = vadd.xlane.f32.xlu0 %v928
        %v930 = vpop.xlane.xlu0 %929
        %v931 = vsel %vm656, %v922, 0.0
        %932 = vadd.xlane.f32.xlu0 %v931
        %v933 = vpop.xlane.xlu0 %932
        %v934 = vsel %vm656, %v924, 0.0
        %935 = vadd.xlane.f32.xlu0 %v934
        %v936 = vpop.xlane.xlu0 %935
        %v937 = vrcp.pop %v927
        %v938 = vrcp.pop %v930
        %v939 = vrcp.pop %v933
        %v940 = vrcp.pop %v936
        %v941 = vmul.f32 %v918, %v937
        %v942 = vmul.f32 %v920, %v938
        %v943 = vmul.f32 %v922, %v939
        %v944 = vmul.f32 %v924, %v940
        %v945 = vpack.c.bf16 %v941, %v941
        %v946 = vpack.c.bf16 %v942, %v942
        %v947 = vpack.c.bf16 %v943, %v943
        %v948 = vpack.c.bf16 %v944, %v944
        %v950 = vsel %vm656, %v636, 0
        %v953 = vsel %vm656, %v945, 0
        %955 = vmatprep.subr.bf16.mxu0 0
        %956 = vmatpush1.bf16.xpose.msra.mxu0 %v953
        %957 = vmatprep.subr.bf16.mxu0 0
        %958 = vmatpush1.bf16.xpose.msra.mxu0 0
        %959 = vmatprep.subr.bf16.mxu0 0
        %960 = vmatpush1.bf16.xpose.msra.mxu0 0
        %961 = vmatprep.subr.bf16.mxu0 0
        %962 = vmatpush1.bf16.xpose.msra.mxu0 0
        %963 = vmatprep.subr.bf16.mxu0 0
        %964 = vmatpush1.bf16.xpose.msra.mxu0 0
        %965 = vmatprep.subr.bf16.mxu0 0
        %966 = vmatpush1.bf16.xpose.msra.mxu0 0
        %967 = vmatprep.subr.bf16.mxu0 0
        %968 = vmatpush1.bf16.xpose.msra.mxu0 0
        %969 = vmatprep.subr.bf16.mxu0 0
        %970 = vmatpush1.bf16.xpose.msra.mxu0 0
        %971 = vmatprep.subr.bf16.mxu0 0
        %972 = vmatpush1.bf16.xpose.msra.mxu0 0
        %973 = vmatprep.subr.bf16.mxu0 0
        %974 = vmatpush1.bf16.xpose.msra.mxu0 0
        %975 = vmatprep.subr.bf16.mxu0 0
        %976 = vmatpush1.bf16.xpose.msra.mxu0 0
        %977 = vmatprep.subr.bf16.mxu0 0
        %978 = vmatpush1.bf16.xpose.msra.mxu0 0
        %979 = vmatprep.subr.bf16.mxu0 0
        %980 = vmatpush1.bf16.xpose.msra.mxu0 0
        %981 = vmatprep.subr.bf16.mxu0 0
        %982 = vmatpush1.bf16.xpose.msra.mxu0 0
        %983 = vmatprep.subr.bf16.mxu0 0
        %984 = vmatpush1.bf16.xpose.msra.mxu0 0
        %985 = vmatprep.subr.bf16.mxu0 0
        %986 = vmatpush1.bf16.xpose.msra.mxu0 0
        %987 = vmatprep.mubr.bf16.mxu0 0
        %988 = vmatmul.mubr.bf16.gmra.mrb[0].mxu0 %v950
        %v989 = vpop.f32.mrb[0].mxu0
        %v990 = vadd.f32 0.0, %v989
        %v991 = vpop.f32.mrb[0].mxu0
        %v992 = vpop.f32.mrb[0].mxu0
        %v993 = vpop.f32.mrb[0].mxu0
        %994 = vdwg.mxu0
        %v996 = vsel %vm656, %v637, 0
        %v999 = vsel %vm656, %v946, 0
        %1001 = vmatprep.subr.bf16.mxu0 0
        %1002 = vmatpush1.bf16.xpose.msra.mxu0 %v999
        %1003 = vmatprep.subr.bf16.mxu0 0
        %1004 = vmatpush1.bf16.xpose.msra.mxu0 0
        %1005 = vmatprep.subr.bf16.mxu0 0
        %1006 = vmatpush1.bf16.xpose.msra.mxu0 0
        %1007 = vmatprep.subr.bf16.mxu0 0
        %1008 = vmatpush1.bf16.xpose.msra.mxu0 0
        %1009 = vmatprep.subr.bf16.mxu0 0
        %1010 = vmatpush1.bf16.xpose.msra.mxu0 0
        %1011 = vmatprep.subr.bf16.mxu0 0
        %1012 = vmatpush1.bf16.xpose.msra.mxu0 0
        %1013 = vmatprep.subr.bf16.mxu0 0
        %1014 = vmatpush1.bf16.xpose.msra.mxu0 0
        %1015 = vmatprep.subr.bf16.mxu0 0
        %1016 = vmatpush1.bf16.xpose.msra.mxu0 0
        %1017 = vmatprep.subr.bf16.mxu0 0
        %1018 = vmatpush1.bf16.xpose.msra.mxu0 0
        %1019 = vmatprep.subr.bf16.mxu0 0
        %1020 = vmatpush1.bf16.xpose.msra.mxu0 0
        %1021 = vmatprep.subr.bf16.mxu0 0
        %1022 = vmatpush1.bf16.xpose.msra.mxu0 0
        %1023 = vmatprep.subr.bf16.mxu0 0
        %1024 = vmatpush1.bf16.xpose.msra.mxu0 0
        %1025 = vmatprep.subr.bf16.mxu0 0
        %1026 = vmatpush1.bf16.xpose.msra.mxu0 0
        %1027 = vmatprep.subr.bf16.mxu0 0
        %1028 = vmatpush1.bf16.xpose.msra.mxu0 0
        %1029 = vmatprep.subr.bf16.mxu0 0
        %1030 = vmatpush1.bf16.xpose.msra.mxu0 0
        %1031 = vmatprep.subr.bf16.mxu0 0
        %1032 = vmatpush1.bf16.xpose.msra.mxu0 0
        %1033 = vmatprep.mubr.bf16.mxu0 0
        %1034 = vmatmul.mubr.bf16.gmra.mrb[0].mxu0 %v996
        %v1035 = vpop.f32.mrb[0].mxu0
        %v1036 = vadd.f32 0.0, %v1035
        %v1037 = vpop.f32.mrb[0].mxu0
        %v1038 = vpop.f32.mrb[0].mxu0
        %v1039 = vpop.f32.mrb[0].mxu0
        %1040 = vdwg.mxu0
        %v1042 = vsel %vm656, %v638, 0
        %v1045 = vsel %vm656, %v947, 0
        %1047 = vmatprep.subr.bf16.mxu0 0
        %1048 = vmatpush1.bf16.xpose.msra.mxu0 %v1045
        %1049 = vmatprep.subr.bf16.mxu0 0
        %1050 = vmatpush1.bf16.xpose.msra.mxu0 0
        %1051 = vmatprep.subr.bf16.mxu0 0
        %1052 = vmatpush1.bf16.xpose.msra.mxu0 0
        %1053 = vmatprep.subr.bf16.mxu0 0
        %1054 = vmatpush1.bf16.xpose.msra.mxu0 0
        %1055 = vmatprep.subr.bf16.mxu0 0
        %1056 = vmatpush1.bf16.xpose.msra.mxu0 0
        %1057 = vmatprep.subr.bf16.mxu0 0
        %1058 = vmatpush1.bf16.xpose.msra.mxu0 0
        %1059 = vmatprep.subr.bf16.mxu0 0
        %1060 = vmatpush1.bf16.xpose.msra.mxu0 0
        %1061 = vmatprep.subr.bf16.mxu0 0
        %1062 = vmatpush1.bf16.xpose.msra.mxu0 0
        %1063 = vmatprep.subr.bf16.mxu0 0
        %1064 = vmatpush1.bf16.xpose.msra.mxu0 0
        %1065 = vmatprep.subr.bf16.mxu0 0
        %1066 = vmatpush1.bf16.xpose.msra.mxu0 0
        %1067 = vmatprep.subr.bf16.mxu0 0
        %1068 = vmatpush1.bf16.xpose.msra.mxu0 0
        %1069 = vmatprep.subr.bf16.mxu0 0
        %1070 = vmatpush1.bf16.xpose.msra.mxu0 0
        %1071 = vmatprep.subr.bf16.mxu0 0
        %1072 = vmatpush1.bf16.xpose.msra.mxu0 0
        %1073 = vmatprep.subr.bf16.mxu0 0
        %1074 = vmatpush1.bf16.xpose.msra.mxu0 0
        %1075 = vmatprep.subr.bf16.mxu0 0
        %1076 = vmatpush1.bf16.xpose.msra.mxu0 0
        %1077 = vmatprep.subr.bf16.mxu0 0
        %1078 = vmatpush1.bf16.xpose.msra.mxu0 0
        %1079 = vmatprep.mubr.bf16.mxu0 0
        %1080 = vmatmul.mubr.bf16.gmra.mrb[0].mxu0 %v1042
        %v1081 = vpop.f32.mrb[0].mxu0
        %v1082 = vadd.f32 0.0, %v1081
        %v1083 = vpop.f32.mrb[0].mxu0
        %v1084 = vpop.f32.mrb[0].mxu0
        %v1085 = vpop.f32.mrb[0].mxu0
        %1086 = vdwg.mxu0
        %v1088 = vsel %vm656, %v639, 0
        %v1091 = vsel %vm656, %v948, 0
        %1093 = vmatprep.subr.bf16.mxu0 0
        %1094 = vmatpush1.bf16.xpose.msra.mxu0 %v1091
        %1095 = vmatprep.subr.bf16.mxu0 0
        %1096 = vmatpush1.bf16.xpose.msra.mxu0 0
        %1097 = vmatprep.subr.bf16.mxu0 0
        %1098 = vmatpush1.bf16.xpose.msra.mxu0 0
        %1099 = vmatprep.subr.bf16.mxu0 0
        %1100 = vmatpush1.bf16.xpose.msra.mxu0 0
        %1101 = vmatprep.subr.bf16.mxu0 0
        %1102 = vmatpush1.bf16.xpose.msra.mxu0 0
        %1103 = vmatprep.subr.bf16.mxu0 0
        %1104 = vmatpush1.bf16.xpose.msra.mxu0 0
        %1105 = vmatprep.subr.bf16.mxu0 0
        %1106 = vmatpush1.bf16.xpose.msra.mxu0 0
        %1107 = vmatprep.subr.bf16.mxu0 0
        %1108 = vmatpush1.bf16.xpose.msra.mxu0 0
        %1109 = vmatprep.subr.bf16.mxu0 0
        %1110 = vmatpush1.bf16.xpose.msra.mxu0 0
        %1111 = vmatprep.subr.bf16.mxu0 0
        %1112 = vmatpush1.bf16.xpose.msra.mxu0 0
        %1113 = vmatprep.subr.bf16.mxu0 0
        %1114 = vmatpush1.bf16.xpose.msra.mxu0 0
        %1115 = vmatprep.subr.bf16.mxu0 0
        %1116 = vmatpush1.bf16.xpose.msra.mxu0 0
        %1117 = vmatprep.subr.bf16.mxu0 0
        %1118 = vmatpush1.bf16.xpose.msra.mxu0 0
        %1119 = vmatprep.subr.bf16.mxu0 0
        %1120 = vmatpush1.bf16.xpose.msra.mxu0 0
        %1121 = vmatprep.subr.bf16.mxu0 0
        %1122 = vmatpush1.bf16.xpose.msra.mxu0 0
        %1123 = vmatprep.subr.bf16.mxu0 0
        %1124 = vmatpush1.bf16.xpose.msra.mxu0 0
        %1125 = vmatprep.mubr.bf16.mxu0 0
        %1126 = vmatmul.mubr.bf16.gmra.mrb[0].mxu0 %v1088
        %v1127 = vpop.f32.mrb[0].mxu0
        %v1128 = vadd.f32 0.0, %v1127
        %v1129 = vpop.f32.mrb[0].mxu0
        %v1130 = vpop.f32.mrb[0].mxu0
        %v1131 = vpop.f32.mrb[0].mxu0
        %1132 = vdwg.mxu0
        %v1133 = vpack.c.bf16 %v1036, %v990
        %v1134 = vpack.c.bf16 %v1128, %v1082
        %v1135 = vld [vmem:[%s7] sm:$0xf]
        %v1136 = vld [vmem:[%s7 + $0x4] sm:$0xf]
        %v1137 = vld [vmem:[%s7 + $0x8] sm:$0xf]
        %v1138 = vld [vmem:[%s7 + $0xc] sm:$0xf]
        %v1139 = vld [vmem:[%s8] sm:$0x1]
        %v1141 = vlaneseq
        %v1142 = vshrl.u32 %v1141, 7
        %v1143 = vsub.s32 0, %v1142
        %v1144 = vrot.slane %v1139, %v1143
        %1146 = vxpose.xlu0.c.b16.start [1/8] %v1133, 128
        %1147 = vxpose.xlu0.c.b16.cont [2/8] %v1134, 128
        %1148 = vxpose.xlu0.c.b16.cont [3/8] 0, 128
        %1149 = vxpose.xlu0.c.b16.cont [4/8] 0, 128
        %1150 = vxpose.xlu0.c.b16.cont [5/8] 0, 128
        %1151 = vxpose.xlu0.c.b16.cont [6/8] 0, 128
        %1152 = vxpose.xlu0.c.b16.cont [7/8] 0, 128
        %1153 = vxpose.xlu0.c.b16.end [8/8] 0, 128
        %v1154 = vpop.trf.xlu0
        %v1155 = vpop.trf.xlu0
        %v1156 = vpop.trf.xlu0
        %v1157 = vpop.trf.xlu0
        %v1158 = vpop.trf.xlu0
        %v1159 = vpop.trf.xlu0
        %v1160 = vpop.trf.xlu0
        %v1161 = vpop.trf.xlu0
        %v1166 = vunpack.c.l.b16 %v1135
        %v1167 = vunpack.c.l.b16 %v1136
        %v1168 = vunpack.c.l.b16 %v1137
        %v1169 = vunpack.c.l.b16 %v1138
        %v1170 = vpack.c.b16 %v1167, %v1166
        %v1171 = vpack.c.b16 %v1169, %v1168
        %v1175 = vsel %vm386, %v1154, 0
        %1177 = vmatprep.subr.bf16.mxu0 0
        %1178 = vmatpush1.bf16.msra.mxu0 %v1170
        %1179 = vmatprep.subr.bf16.mxu0 0
        %1180 = vmatpush1.bf16.msra.mxu0 %v1171
        %1181 = vmatprep.subr.bf16.mxu0 0
        %1182 = vmatpush1.bf16.msra.mxu0 0
        %1183 = vmatprep.subr.bf16.mxu0 0
        %1184 = vmatpush1.bf16.msra.mxu0 0
        %1185 = vmatprep.subr.bf16.mxu0 0
        %1186 = vmatpush1.bf16.msra.mxu0 0
        %1187 = vmatprep.subr.bf16.mxu0 0
        %1188 = vmatpush1.bf16.msra.mxu0 0
        %1189 = vmatprep.subr.bf16.mxu0 0
        %1190 = vmatpush1.bf16.msra.mxu0 0
        %1191 = vmatprep.subr.bf16.mxu0 0
        %1192 = vmatpush1.bf16.msra.mxu0 0
        %1193 = vmatprep.subr.bf16.mxu0 0
        %1194 = vmatpush1.bf16.msra.mxu0 0
        %1195 = vmatprep.subr.bf16.mxu0 0
        %1196 = vmatpush1.bf16.msra.mxu0 0
        %1197 = vmatprep.subr.bf16.mxu0 0
        %1198 = vmatpush1.bf16.msra.mxu0 0
        %1199 = vmatprep.subr.bf16.mxu0 0
        %1200 = vmatpush1.bf16.msra.mxu0 0
        %1201 = vmatprep.subr.bf16.mxu0 0
        %1202 = vmatpush1.bf16.msra.mxu0 0
        %1203 = vmatprep.subr.bf16.mxu0 0
        %1204 = vmatpush1.bf16.msra.mxu0 0
        %1205 = vmatprep.subr.bf16.mxu0 0
        %1206 = vmatpush1.bf16.msra.mxu0 0
        %1207 = vmatprep.subr.bf16.mxu0 0
        %1208 = vmatpush1.bf16.msra.mxu0 0
        %1209 = vmatprep.mubr.bf16.mxu0 0
        %1210 = vmatmul.mubr.bf16.gmra.mrb[0].mxu0 %v1175
        %v1211 = vpop.f32.mrb[0].mxu0
        %v1212 = vadd.f32 %v1144, %v1211
        %v1213 = vpop.f32.mrb[0].mxu0
        %v1214 = vpop.f32.mrb[0].mxu0
        %v1215 = vpop.f32.mrb[0].mxu0
        %1216 = vdwg.mxu0
        %1217 = vst.msk [vmem:[%s325] sm:$0xff] %vm386, %v1212
        %s1218 = sand.u32 %s225, 1
        %s1219 = scalar_lea.sflag [#allocation3], %s1218
        %s1220 = sand.u32 %s225, 1
        %s1221 = smul.addr %s1220, 8
        %s1222 = scalar_lea.vmem [#allocation2], %s1221
        // Predicated region
        $region57: #{tpu_custom_call.1} parent=55 // pred_check
          %p1223 = pneg %p235
        $region58: #{tpu_custom_call.1} parent=55 // pred_check_branch
          %1225 = sbr.rel (%p1223) target = $region60
        $region59: #{tpu_custom_call.1} parent=55 // pred_region
          %s1227 = ssub.s32 128, 128
          %1228 = vsyncadd %s1219, %s1227
          %s1229 = smul.addr %s23, 128
          %s1230 = scalar_lea.hbm %s9, %s1229
          %s1232 = sshll.u32 %s1222, 4
          %s1233 = int_to_ptr.vmem [resolvable:$true] %s1232
          %1235 = dma.vmem_to_hbm [thread:$0]  %s1233, 128, %s1230, %s1219
        $region60: #{tpu_custom_call.1} parent=55 // pred_fallthru
          _
      $region56: #{tpu_custom_call.1} parent=5 // pred_fallthru
        _
      %p1236 = scmp.le.s32.totalorder 2, %s18
      // Predicated region
      $region61: #{tpu_custom_call.1} parent=5 // pred_check
        %p1237 = pneg %p1236
      $region62: #{tpu_custom_call.1} parent=5 // pred_check_branch
        %1239 = sbr.rel (%p1237) target = $region64
      $region63: #{tpu_custom_call.1} parent=5 // pred_region
        %s1240 = ssub.s32 %s18, 2
        // Predicated region
        $region65: #{tpu_custom_call.1} parent=63 // pred_check
          %p1241 = pneg %p241
        $region66: #{tpu_custom_call.1} parent=63 // pred_check_branch
          %1243 = sbr.rel (%p1241) target = $region68
        $region67: #{tpu_custom_call.1} parent=63 // pred_region
          %s1244 = sand.u32 %s226, 1
          %s1245 = scalar_lea.sflag [#allocation3], %s1244
          %s1246 = sand.u32 %s226, 1
          %s1247 = smul.addr %s1246, 8
          %s1248 = scalar_lea.vmem [#allocation2], %s1247
          %1249 = dma.done %s1245, 128
        $region68: #{tpu_custom_call.1} parent=63 // pred_fallthru
          _
      $region64: #{tpu_custom_call.1} parent=5 // pred_fallthru
        _
    $region6: #{tpu_custom_call.1} parent=1 // loop_footer
      %s22 = sadd.s32 1, %s18
    $region7: #{tpu_custom_call.1} parent=1 // loop_footer_branch
      %17 = sbr.rel target = $region3
    $region8: #{tpu_custom_call.1} parent=1 // loop_exit
      _
    %1250 = vsyncpa [#allocation3], 1
    %s1251 = scalar_lea.sflag [#allocation3], 1
    %1252 = vsyncpa %s1251, 1

</llo_original>
